<compile_context>
chip_gen: v6e
topology: v6e:2x2x1
jax: 0.10.0
libtpu: 0.0.40
codegen_flags: <defaults>
</compile_context>

<pallas_src>
import jax
import jax.numpy as jnp
from jax.experimental import pallas as pl
from jax.experimental.pallas import tpu as pltpu


def _scaling_kernel(shift_ref, inv_scale_ref, x_ref, o_ref):
    # shift_ref, inv_scale_ref: SMEM, shape (C,), float32.
    # x_ref, o_ref: VMEM, shape (b_tile, C, r_tile, lane) for this grid point.
    C = x_ref.shape[1]
    for ci in range(C):  # static unroll; C == 3
        x = x_ref[:, ci].astype(jnp.float32)
        o_ref[:, ci] = ((x - shift_ref[ci]) * inv_scale_ref[ci]).astype(o_ref.dtype)


def _cdiv(a, b):
    return -(-a // b)


def _largest_divisor(n, candidates):
    for cand in candidates:
        if 0 < cand <= n and n % cand == 0:
            return cand
    return None


def _smallest_divisor_at_least(n, lo):
    for d in range(max(1, lo), n + 1):
        if n % d == 0:
            return d
    return n


def _target_block_bytes():
    """Generation-aware block sizing; bigger blocks amortize the ~0.35 us
    per-grid-step overhead where HBM is fast, while the default stays within
    v5e's 16 MiB scoped-VMEM default (4 double-buffers per block)."""
    target = 3 << 20  # v5e / unknown
    try:
        kind = jax.devices()[0].device_kind.lower()
    except Exception:
        return target
    if "v6" in kind or "6e" in kind:
        target = 4 << 20
    if "v7" in kind or "7x" in kind:
        target = 6 << 20
    return target


def _choose_layout(N, C, H, W, itemsize, target_block_bytes):
    """Pick a lane-dense spatial view (rows, lane) and block tiling."""
    HW = H * W
    if HW % 128 == 0:
        # Largest multiple of 128 that divides HW, capped at 1024 lanes.
        lane = _largest_divisor(HW, range(1024, 127, -128))
        rows = HW // lane
    elif W < 128:
        # Group g image rows per lane-row (free contiguous view of NCHW) so
        # stores are >=128 lanes wide instead of W-wide masked stores.
        g = _smallest_divisor_at_least(H, _cdiv(128, W))
        rows, lane = H // g, g * W
    else:
        rows, lane = H, W

    # Row tile: whole slab if it fits the budget, otherwise a multiple of 8
    # (partial last block handled by the cdiv grid).
    bytes_per_row = C * lane * itemsize
    max_rows = max(1, target_block_bytes // bytes_per_row)
    if rows <= max_rows:
        r_tile = rows
    else:
        r_tile = min(rows, max(8, (max_rows // 8) * 8))

    # Batch tile: pack several images per block when one slab is small.
    b_tile = 1
    if r_tile == rows:
        slab_bytes = C * rows * lane * itemsize
        b_tile = min(N, max(1, target_block_bytes // slab_bytes))

    # Megacore balance: keep at least 2 grid steps whenever possible.
    if _cdiv(N, b_tile) * _cdiv(rows, r_tile) < 2:
        if N >= 2:
            b_tile = _cdiv(N, 2)
        elif rows >= 16:
            r_tile = max(8, (_cdiv(rows, 2) // 8) * 8)

    return rows, lane, r_tile, b_tile


def scaling_layer(inp: jax.Array, shift: jax.Array, scale: jax.Array) -> jax.Array:
    """Pallas implementation of ScalingLayer.forward.

    inp:   (N, C, H, W)
    shift: (C,)
    scale: (C,)
    returns (N, C, H, W)
    """
    N, C, H, W = inp.shape
    assert shift.shape == (C,) and scale.shape == (C,)
    itemsize = inp.dtype.itemsize

    # Constants stay float32 (matching PyTorch's f32 buffers); reciprocal is
    # precomputed so the kernel does one VPU multiply instead of a divide.
    shift_f32 = shift.astype(jnp.float32)
    inv_scale_f32 = (1.0 / scale.astype(jnp.float32))

    target = _target_block_bytes()
    rows, lane, r_tile, b_tile = _choose_layout(N, C, H, W, itemsize, target)

    x = inp.reshape(N, C, rows, lane)  # free contiguous view of NCHW

    grid = (_cdiv(N, b_tile), _cdiv(rows, r_tile))
    block = (b_tile, C, r_tile, lane)
    idx = lambda n, t: (n, 0, t, 0)

    # Explicit scoped-VMEM limit sized to the actual block (2 in + 2 out
    # double buffers + margin), so larger v6e/v7x blocks compile everywhere.
    block_bytes = b_tile * C * r_tile * lane * itemsize
    vmem_limit = int(min(40 << 20, max(16 << 20, 4 * block_bytes + (4 << 20))))

    cost = pl.CostEstimate(
        flops=2 * N * C * H * W,
        transcendentals=0,
        bytes_accessed=2 * N * C * rows * lane * itemsize,
    )

    out = pl.pallas_call(
        _scaling_kernel,
        out_shape=jax.ShapeDtypeStruct((N, C, rows, lane), inp.dtype),
        grid=grid,
        in_specs=[
            pl.BlockSpec(memory_space=pltpu.SMEM),  # shift     (C,) f32
            pl.BlockSpec(memory_space=pltpu.SMEM),  # 1 / scale (C,) f32
            pl.BlockSpec(block, idx),
        ],
        out_specs=pl.BlockSpec(block, idx),
        compiler_params=pltpu.CompilerParams(
            dimension_semantics=("parallel", "parallel"),
            vmem_limit_bytes=vmem_limit,
        ),
        cost_estimate=cost,
    )(shift_f32, inv_scale_f32, x)

    return out.reshape(N, C, H, W)


if __name__ == "__main__":
    # Fixed buffers from the module's __init__ (C is forced to 3 by the spec).
    shift = jnp.array([-0.030, -0.088, -0.188], dtype=jnp.float32)
    scale = jnp.array([0.458, 0.448, 0.450], dtype=jnp.float32)

    key = jax.random.PRNGKey(0)
    k1, k2 = jax.random.split(key)

    ok = True
    test_inputs = (
        jax.random.normal(k1, (2, 3, 16, 16), dtype=jnp.float32),  # H*W % 128 == 0 path
        jax.random.normal(k2, (2, 3, 14, 14), dtype=jnp.float32),  # grouped-row fallback path
    )
    for x in test_inputs:
        out = jax.block_until_ready(scaling_layer(x, shift, scale))
        # Reference in plain JAX (same broadcasting as PyTorch [None,:,None,None]).
        ref = (x - shift[None, :, None, None]) / scale[None, :, None, None]
        # reciprocal*mul vs true divide differs by ~1 ulp; tolerance covers that.
        ok = ok and bool(jnp.allclose(out, ref, atol=1e-6, rtol=1e-5))

    assert ok, "mismatch vs reference"
    print("KERNEL_OK")
</pallas_src>

<mosaic_0001>
module attributes {stable_mosaic.version = 11 : i64} {
  func.func @_scaling_kernel(%arg0: i32, %arg1: i32, %arg2: memref<3xf32, #tpu.memory_space<smem>>, %arg3: memref<3xf32, #tpu.memory_space<smem>>, %arg4: memref<1x3x1x256xf32, #tpu.memory_space<vmem>>, %arg5: memref<1x3x1x256xf32, #tpu.memory_space<vmem>>) attributes {dimension_semantics = [#tpu.dimension_semantics<parallel>, #tpu.dimension_semantics<parallel>], iteration_bounds = array<i64: 2, 1>, scalar_prefetch = 0 : i64, scratch_operands = 0 : i64, tpu.core_type = #tpu.core_type<tc>, window_params = [{transform_indices = @transform_0, window_bounds = array<i64: 3>}, {transform_indices = @transform_1, window_bounds = array<i64: 3>}, {transform_indices = @transform_2, window_bounds = array<i64: 1, 3, 1, 256>}, {transform_indices = @transform_3, window_bounds = array<i64: 1, 3, 1, 256>}]} {
    %c0 = arith.constant 0 : index
    %c0_0 = arith.constant 0 : index
    %c0_1 = arith.constant 0 : index
    %c0_2 = arith.constant 0 : index
    %0 = vector.load %arg4[%c0, %c0_0, %c0_1, %c0_2] : memref<1x3x1x256xf32, #tpu.memory_space<vmem>>, vector<1x1x1x256xf32>
    %1 = vector.shape_cast %0 : vector<1x1x1x256xf32> to vector<1x1x256xf32>
    %c0_3 = arith.constant 0 : index
    %2 = memref.load %arg2[%c0_3] : memref<3xf32, #tpu.memory_space<smem>>
    %3 = vector.broadcast %2 : f32 to vector<1x1x256xf32>
    %4 = arith.subf %1, %3 : vector<1x1x256xf32>
    %c0_4 = arith.constant 0 : index
    %5 = memref.load %arg3[%c0_4] : memref<3xf32, #tpu.memory_space<smem>>
    %6 = vector.broadcast %5 : f32 to vector<1x1x256xf32>
    %7 = arith.mulf %4, %6 : vector<1x1x256xf32>
    %c0_5 = arith.constant 0 : index
    %c0_6 = arith.constant 0 : index
    %c0_7 = arith.constant 0 : index
    %c0_8 = arith.constant 0 : index
    %8 = vector.load %arg5[%c0_5, %c0_6, %c0_7, %c0_8] : memref<1x3x1x256xf32, #tpu.memory_space<vmem>>, vector<1x1x1x256xf32>
    %9 = vector.shape_cast %8 : vector<1x1x1x256xf32> to vector<1x1x256xf32>
    %10 = vector.shape_cast %7 : vector<1x1x256xf32> to vector<1x1x1x256xf32>
    tpu.vector_store %arg5[%c0_5, %c0_6, %c0_7, %c0_8], %10 {strides = array<i32>} : memref<1x3x1x256xf32, #tpu.memory_space<vmem>>, vector<1x1x1x256xf32>,
    %c0_9 = arith.constant 0 : index
    %c1 = arith.constant 1 : index
    %c0_10 = arith.constant 0 : index
    %c0_11 = arith.constant 0 : index
    %11 = vector.load %arg4[%c0_9, %c1, %c0_10, %c0_11] : memref<1x3x1x256xf32, #tpu.memory_space<vmem>>, vector<1x1x1x256xf32>
    %12 = vector.shape_cast %11 : vector<1x1x1x256xf32> to vector<1x1x256xf32>
    %c1_12 = arith.constant 1 : index
    %13 = memref.load %arg2[%c1_12] : memref<3xf32, #tpu.memory_space<smem>>
    %14 = vector.broadcast %13 : f32 to vector<1x1x256xf32>
    %15 = arith.subf %12, %14 : vector<1x1x256xf32>
    %c1_13 = arith.constant 1 : index
    %16 = memref.load %arg3[%c1_13] : memref<3xf32, #tpu.memory_space<smem>>
    %17 = vector.broadcast %16 : f32 to vector<1x1x256xf32>
    %18 = arith.mulf %15, %17 : vector<1x1x256xf32>
    %c0_14 = arith.constant 0 : index
    %c1_15 = arith.constant 1 : index
    %c0_16 = arith.constant 0 : index
    %c0_17 = arith.constant 0 : index
    %19 = vector.load %arg5[%c0_14, %c1_15, %c0_16, %c0_17] : memref<1x3x1x256xf32, #tpu.memory_space<vmem>>, vector<1x1x1x256xf32>
    %20 = vector.shape_cast %19 : vector<1x1x1x256xf32> to vector<1x1x256xf32>
    %21 = vector.shape_cast %18 : vector<1x1x256xf32> to vector<1x1x1x256xf32>
    tpu.vector_store %arg5[%c0_14, %c1_15, %c0_16, %c0_17], %21 {strides = array<i32>} : memref<1x3x1x256xf32, #tpu.memory_space<vmem>>, vector<1x1x1x256xf32>,
    %c0_18 = arith.constant 0 : index
    %c2 = arith.constant 2 : index
    %c0_19 = arith.constant 0 : index
    %c0_20 = arith.constant 0 : index
    %22 = vector.load %arg4[%c0_18, %c2, %c0_19, %c0_20] : memref<1x3x1x256xf32, #tpu.memory_space<vmem>>, vector<1x1x1x256xf32>
    %23 = vector.shape_cast %22 : vector<1x1x1x256xf32> to vector<1x1x256xf32>
    %c2_21 = arith.constant 2 : index
    %24 = memref.load %arg2[%c2_21] : memref<3xf32, #tpu.memory_space<smem>>
    %25 = vector.broadcast %24 : f32 to vector<1x1x256xf32>
    %26 = arith.subf %23, %25 : vector<1x1x256xf32>
    %c2_22 = arith.constant 2 : index
    %27 = memref.load %arg3[%c2_22] : memref<3xf32, #tpu.memory_space<smem>>
    %28 = vector.broadcast %27 : f32 to vector<1x1x256xf32>
    %29 = arith.mulf %26, %28 : vector<1x1x256xf32>
    %c0_23 = arith.constant 0 : index
    %c2_24 = arith.constant 2 : index
    %c0_25 = arith.constant 0 : index
    %c0_26 = arith.constant 0 : index
    %30 = vector.load %arg5[%c0_23, %c2_24, %c0_25, %c0_26] : memref<1x3x1x256xf32, #tpu.memory_space<vmem>>, vector<1x1x1x256xf32>
    %31 = vector.shape_cast %30 : vector<1x1x1x256xf32> to vector<1x1x256xf32>
    %32 = vector.shape_cast %29 : vector<1x1x256xf32> to vector<1x1x1x256xf32>
    tpu.vector_store %arg5[%c0_23, %c2_24, %c0_25, %c0_26], %32 {strides = array<i32>} : memref<1x3x1x256xf32, #tpu.memory_space<vmem>>, vector<1x1x1x256xf32>,
    return
  }
  func.func @transform_0(%arg0: i32, %arg1: i32) -> i32 {
    %c0_i32 = arith.constant 0 : i32
    %c0_i32_0 = arith.constant 0 : i32
    return %c0_i32 : i32
  }
  func.func @transform_1(%arg0: i32, %arg1: i32) -> i32 {
    %c0_i32 = arith.constant 0 : i32
    %c0_i32_0 = arith.constant 0 : i32
    return %c0_i32 : i32
  }
  func.func @transform_2(%arg0: i32, %arg1: i32) -> (i32, i32, i32, i32) {
    %c0_i32 = arith.constant 0 : i32
    %c0_i32_0 = arith.constant 0 : i32
    %c0_i32_1 = arith.constant 0 : i32
    return %arg0, %c0_i32, %arg1, %c0_i32_0 : i32, i32, i32, i32
  }
  func.func @transform_3(%arg0: i32, %arg1: i32) -> (i32, i32, i32, i32) {
    %c0_i32 = arith.constant 0 : i32
    %c0_i32_0 = arith.constant 0 : i32
    %c0_i32_1 = arith.constant 0 : i32
    return %arg0, %c0_i32, %arg1, %c0_i32_0 : i32, i32, i32, i32
  }
}

</mosaic_0001>

<llo_original>
// kernel: tpu_custom_call.1
$region0: #{tpu_custom_call.1}
  #allocation0 [shape = 'u32[]', space=smem, size = 0x4, offset = 0x4, fixed_abs, tag = 'smem constant byte address 0x4 - core index']
  #allocation1 [shape = 'u32[144,128]{1,0:T(1,128)}', space=vmem, size = 0x12000, scoped, tag = 'internal scratch']
  %s0 = inlined_call_operand.hbm [shape: f32[3], index: 0, kind: input, shape index: {}]
  %s1 = inlined_call_operand.vmem [shape: f32[3], index: 1, kind: input, shape index: {}]
  %s2 = inlined_call_operand.hbm [shape: f32[2,3,1,256], index: 2, kind: input, shape index: {}]
  %s3 = inlined_call_operand.hbm [shape: f32[2,3,1,256], index: 3, kind: output, shape index: {}]
  %s4 = sld [smem:[#allocation0]]
  $region57: #{tpu_custom_call.1} parent=0
    _
  %s6 = ssub.s32 1, %s4
  %s7 = scalar_select 0, %s6, %s4
  $region1: #{tpu_custom_call.1} parent=0
    #allocation2 [shape = 'u8[512]{0}', space=smem, size = 0x200, scoped, tag = 'input window, operand 0, single buffered']
    #allocation3 [shape = 's32[2]{0}', space=sflag, size = 0x8, scoped, tag = 'scoped memory for tpu_custom_call.1']
    #allocation4 [shape = 's32[2]{0}', space=sflag, size = 0x8, scoped, tag = 'scoped memory for tpu_custom_call.1']
    #allocation5 [shape = 's32[2]{0}', space=sflag, size = 0x8, scoped, tag = 'scoped memory for tpu_custom_call.1']
    #allocation6 [shape = 's32[2]{0}', space=sflag, size = 0x8, scoped, tag = 'scoped memory for tpu_custom_call.1']
    #allocation7 [shape = 'u8[512]{0}', space=smem, size = 0x200, scoped, tag = 'input window, operand 1, single buffered']
    #allocation8 [shape = 'u8[6144]{0}', space=vmem, size = 0x1800, scoped, tag = 'input window, operand 2']
    #allocation9 [shape = 'u8[6144]{0}', space=vmem, size = 0x1800, scoped, tag = 'output window, operand 0']
    %8 = vsyncpa [#allocation5], 0
    %9 = vsyncpa [#allocation6], 0
    %10 = vsyncpa [#allocation3], 0
    %s11 = scalar_lea.sflag [#allocation3], 1
    %12 = vsyncpa %s11, 0
    %13 = vsyncpa [#allocation4], 0
    %s14 = scalar_lea.sflag [#allocation4], 1
    %15 = vsyncpa %s14, 0
    loop: start=0, step=1, limit=4
    $region2: #{tpu_custom_call.1} parent=1 // loop_pre_header
      _
    $region3: #{tpu_custom_call.1} parent=1 // loop_header
      %s17 = sphi 0, %s21
      %p18 = scmp.ge.s32.totalorder %s17, 4
      %s24 = sphi 0, %s36
      %s25 = sphi 0, %s32
      %s26 = sphi 0, %s24
      %s27 = sphi 0, %s25
      %s28 = sphi 0, %s26
      %s29 = sphi 0, %s27
      %s37 = sphi 0, %s37
      %s39 = sphi 0, %s37
      %s40 = sphi 0, %s39
      %s54 = sphi 0, %s40
      %s58 = sphi 0, %s58
      %s60 = sphi 0, %s58
      %s61 = sphi 0, %s60
      %s75 = sphi 0, %s61
      %s83 = sphi 0, %s85
      %s86 = sphi 0, %s83
      %s87 = sphi 0, %s86
      %s103 = sphi 0, %s87
      %s111 = sphi 0, %s113
      %s114 = sphi 0, %s111
      %s115 = sphi 0, %s114
      %s131 = sphi 0, %s115
    $region4: #{tpu_custom_call.1} parent=1 // loop_header_branch
      %20 = sbr.rel (%p18) target = $region8
    $region5: #{tpu_custom_call.1} parent=1 // loop_body
      %s22 = ssub.s32 %s17, 1
      %s23 = ssub.s32 %s17, 2
      %s30 = sadd.s32 1, %s25
      %p31 = scmp.ge.s32.totalorder %s30, 1
      %s32 = scalar_select %p31, 0, %s30
      %s33 = sadd.s32 1, %s24
      %s34 = scalar_select %p31, %s33, %s24
      %p35 = scmp.ge.s32.totalorder %s34, 2
      %s36 = scalar_select %p35, 0, %s34
      %s38 = sadd.s32 %s37, 1
      %p41 = scmp.eq.s32.totalorder %s17, 1
      %p42 = scmp.ne.s32.totalorder %s37, %s39
      %p43 = scmp.eq.s32.totalorder %s17, 0
      %p44 = por %p42, %p43
      %p45 = scmp.ne.s32.totalorder %s37, %s39
      %p46 = scmp.eq.s32.totalorder %s22, 1
      %p47 = por %p45, %p46
      %p48 = scmp.ne.s32.totalorder %s39, %s40
      %p49 = scmp.eq.s32.totalorder %s22, 0
      %p50 = por %p48, %p49
      %p51 = scmp.ne.s32.totalorder %s39, %s40
      %p52 = scmp.eq.s32.totalorder %s23, 1
      %p53 = por %p51, %p52
      %p55 = scmp.ne.s32.totalorder %s40, %s54
      %p56 = scmp.eq.s32.totalorder %s23, 0
      %p57 = por %p55, %p56
      %s59 = sadd.s32 %s58, 1
      %p62 = scmp.eq.s32.totalorder %s17, 1
      %p63 = scmp.ne.s32.totalorder %s58, %s60
      %p64 = scmp.eq.s32.totalorder %s17, 0
      %p65 = por %p63, %p64
      %p66 = scmp.ne.s32.totalorder %s58, %s60
      %p67 = scmp.eq.s32.totalorder %s22, 1
      %p68 = por %p66, %p67
      %p69 = scmp.ne.s32.totalorder %s60, %s61
      %p70 = scmp.eq.s32.totalorder %s22, 0
      %p71 = por %p69, %p70
      %p72 = scmp.ne.s32.totalorder %s60, %s61
      %p73 = scmp.eq.s32.totalorder %s23, 1
      %p74 = por %p72, %p73
      %p76 = scmp.ne.s32.totalorder %s61, %s75
      %p77 = scmp.eq.s32.totalorder %s23, 0
      %p78 = por %p76, %p77
      %s79 = ssub.s32 %s24, %s36
      %s80 = ssub.s32 %s25, %s32
      %s81 = sor.u32 %s79, %s80
      %p82 = scmp.eq.s32.totalorder %s81, 0
      %s84 = sadd.s32 %s83, 1
      %s85 = scalar_select %p82, %s83, %s84
      %p88 = pneg %p82
      %p89 = scmp.eq.s32.totalorder %s17, 1
      %p90 = por %p88, %p89
      %p91 = scmp.ne.s32.totalorder %s83, %s86
      %p92 = scmp.eq.s32.totalorder %s17, 0
      %p93 = por %p91, %p92
      %p94 = scmp.ne.s32.totalorder %s83, %s86
      %p95 = scmp.eq.s32.totalorder %s22, 1
      %p96 = por %p94, %p95
      %p97 = scmp.ne.s32.totalorder %s86, %s87
      %p98 = scmp.eq.s32.totalorder %s22, 0
      %p99 = por %p97, %p98
      %p100 = scmp.ne.s32.totalorder %s86, %s87
      %p101 = scmp.eq.s32.totalorder %s23, 1
      %p102 = por %p100, %p101
      %p104 = scmp.ne.s32.totalorder %s87, %s103
      %p105 = scmp.eq.s32.totalorder %s23, 0
      %p106 = por %p104, %p105
      %s107 = ssub.s32 %s24, %s36
      %s108 = ssub.s32 %s25, %s32
      %s109 = sor.u32 %s107, %s108
      %p110 = scmp.eq.s32.totalorder %s109, 0
      %s112 = sadd.s32 %s111, 1
      %s113 = scalar_select %p110, %s111, %s112
      %p116 = pneg %p110
      %p117 = scmp.eq.s32.totalorder %s17, 1
      %p118 = por %p116, %p117
      %p119 = scmp.ne.s32.totalorder %s111, %s114
      %p120 = scmp.eq.s32.totalorder %s17, 0
      %p121 = por %p119, %p120
      %p122 = scmp.ne.s32.totalorder %s111, %s114
      %p123 = scmp.eq.s32.totalorder %s22, 1
      %p124 = por %p122, %p123
      %p125 = scmp.ne.s32.totalorder %s114, %s115
      %p126 = scmp.eq.s32.totalorder %s22, 0
      %p127 = por %p125, %p126
      %p128 = scmp.ne.s32.totalorder %s114, %s115
      %p129 = scmp.eq.s32.totalorder %s23, 1
      %p130 = por %p128, %p129
      %p132 = scmp.ne.s32.totalorder %s115, %s131
      %p133 = scmp.eq.s32.totalorder %s23, 0
      %p134 = por %p132, %p133
      %p135 = scmp.le.s32.totalorder 1, %s17
      %p136 = scmp.lt.s32.totalorder %s17, 3
      %p137 = pnand %p135, %p136
      %p138 = pneg %p137
      // Predicated region
      $region9: #{tpu_custom_call.1} parent=5 // pred_check
        _
      $region10: #{tpu_custom_call.1} parent=5 // pred_check_branch
        %140 = sbr.rel (%p137) target = $region12
      $region11: #{tpu_custom_call.1} parent=5 // pred_region
        %s141 = ssub.s32 %s17, 1
        // Predicated region
        $region13: #{tpu_custom_call.1} parent=11 // pred_check
          %p142 = pneg %p50
        $region14: #{tpu_custom_call.1} parent=11 // pred_check_branch
          %144 = sbr.rel (%p142) target = $region16
        $region15: #{tpu_custom_call.1} parent=11 // pred_region
          %s146 = ssub.s32 16, 16
          %147 = vsyncadd [#allocation5], %s146
          %150 = dma.hbm_to_smem %s0, 16, [#allocation2], [#allocation5]
        $region16: #{tpu_custom_call.1} parent=11 // pred_fallthru
          _
        // Predicated region
        $region17: #{tpu_custom_call.1} parent=11 // pred_check
          %p151 = pneg %p71
        $region18: #{tpu_custom_call.1} parent=11 // pred_check_branch
          %153 = sbr.rel (%p151) target = $region20
        $region19: #{tpu_custom_call.1} parent=11 // pred_region
          %s155 = ssub.s32 16, 16
          %156 = vsyncadd [#allocation6], %s155
          %s158 = sshll.u32 %s1, 4
          %s159 = int_to_ptr.vmem [resolvable:$true] %s158
          %161 = dma.vmem_to_smem %s159, 16, [#allocation7], [#allocation6]
        $region20: #{tpu_custom_call.1} parent=11 // pred_fallthru
          _
      $region12: #{tpu_custom_call.1} parent=5 // pred_fallthru
        _
      %p162 = scmp.lt.s32.totalorder %s17, 2
      // Predicated region
      $region21: #{tpu_custom_call.1} parent=5 // pred_check
        %p163 = pneg %p162
      $region22: #{tpu_custom_call.1} parent=5 // pred_check_branch
        %165 = sbr.rel (%p163) target = $region24
      $region23: #{tpu_custom_call.1} parent=5 // pred_region
        // Predicated region
        $region25: #{tpu_custom_call.1} parent=23 // pred_check
          %p166 = pneg %p93
        $region26: #{tpu_custom_call.1} parent=23 // pred_check_branch
          %168 = sbr.rel (%p166) target = $region28
        $region27: #{tpu_custom_call.1} parent=23 // pred_region
          %s169 = sand.u32 %s83, 1
          %s170 = scalar_lea.sflag [#allocation3], %s169
          %s171 = sand.u32 %s83, 1
          %s172 = smul.addr %s171, 6
          %s173 = scalar_lea.vmem [#allocation8], %s172
          %s175 = ssub.s32 96, 96
          %176 = vsyncadd %s170, %s175
          %s177 = smul.addr %s25, 2
          %s178 = smul.addr %s24, 6
          %s179 = sadd.s32 %s177, %s178
          %s180 = smul.addr %s179, 16
          %s181 = scalar_lea.hbm %s2, %s180
          %s182 = sshll.u32 %s173, 4
          %s183 = int_to_ptr.vmem [resolvable:$true] %s182
          %188 = dma.hbm_to_vmem [thread:$0]  %s181, 96, %s183, %s170, 32, 32, 2
        $region28: #{tpu_custom_call.1} parent=23 // pred_fallthru
          _
      $region24: #{tpu_custom_call.1} parent=5 // pred_fallthru
        _
      %p189 = scmp.le.s32.totalorder 1, %s17
      %p190 = scmp.lt.s32.totalorder %s17, 3
      %p191 = pnand %p189, %p190
      %p192 = pneg %p191
      // Predicated region
      $region29: #{tpu_custom_call.1} parent=5 // pred_check
        _
      $region30: #{tpu_custom_call.1} parent=5 // pred_check_branch
        %194 = sbr.rel (%p191) target = $region32
      $region31: #{tpu_custom_call.1} parent=5 // pred_region
        %s195 = ssub.s32 %s17, 1
        // Predicated region
        $region33: #{tpu_custom_call.1} parent=31 // pred_check
          %p196 = pneg %p50
        $region34: #{tpu_custom_call.1} parent=31 // pred_check_branch
          %198 = sbr.rel (%p196) target = $region36
        $region35: #{tpu_custom_call.1} parent=31 // pred_region
          %199 = dma.done [#allocation5], 16
        $region36: #{tpu_custom_call.1} parent=31 // pred_fallthru
          _
        // Predicated region
        $region37: #{tpu_custom_call.1} parent=31 // pred_check
          %p200 = pneg %p71
        $region38: #{tpu_custom_call.1} parent=31 // pred_check_branch
          %202 = sbr.rel (%p200) target = $region40
        $region39: #{tpu_custom_call.1} parent=31 // pred_region
          %203 = dma.done [#allocation6], 16
        $region40: #{tpu_custom_call.1} parent=31 // pred_fallthru
          _
        %s204 = sand.u32 %s86, 1
        %s205 = scalar_lea.sflag [#allocation3], %s204
        %s206 = sand.u32 %s86, 1
        %s207 = smul.addr %s206, 6
        %s208 = scalar_lea.vmem [#allocation8], %s207
        // Predicated region
        $region41: #{tpu_custom_call.1} parent=31 // pred_check
          %p209 = pneg %p99
        $region42: #{tpu_custom_call.1} parent=31 // pred_check_branch
          %211 = sbr.rel (%p209) target = $region44
        $region43: #{tpu_custom_call.1} parent=31 // pred_region
          %212 = dma.done %s205, 96
        $region44: #{tpu_custom_call.1} parent=31 // pred_fallthru
          _
        %213 = sfence
        %p214 = pneg %p50
        %p215 = pneg %p47
        %p216 = pneg %p71
        %p217 = pneg %p68
        %s218 = sand.u32 %s86, 1
        %s219 = scalar_lea.sflag [#allocation3], %s218
        %s220 = sand.u32 %s86, 1
        %s221 = smul.addr %s220, 6
        %s222 = scalar_lea.vmem [#allocation8], %s221
        %p223 = pneg %p99
        %p224 = pneg %p96
        %p225 = pneg %p127
        %p226 = pneg %p124
        %s227 = sand.u32 %s114, 1
        %s228 = scalar_lea.sflag [#allocation4], %s227
        %s229 = sand.u32 %s114, 1
        %s230 = smul.addr %s229, 6
        %s231 = scalar_lea.vmem [#allocation9], %s230
        %v232 = vld [vmem:[%s208] sm:$0x3]
        %s233 = sld [smem:[#allocation2]]
        %v234 = vstv %s233
        %v235 = vsub.f32 %v232, %v234
        %s236 = sld [smem:[#allocation7]]
        %v237 = vstv %s236
        %v238 = vmul.f32 %v235, %v237
        %v239 = vlaneseq
        %vm240 = vcmp.ge.s32.totalorder %v239, 0
        %vm241 = vcmp.lt.s32.totalorder %v239, 256
        %vm242 = vmand %vm240, %vm241
        %243 = vst.msk [vmem:[%s231] sm:$0x3] %vm242, %v238
        %s244 = scalar_lea.vmem %s208, 2 [#allocation8]
        %v245 = vld [vmem:[%s244] sm:$0x3]
        %s246 = sld [smem:[#allocation2 + $0x1]]
        %v247 = vstv %s246
        %v248 = vsub.f32 %v245, %v247
        %s249 = sld [smem:[#allocation7 + $0x1]]
        %v250 = vstv %s249
        %v251 = vmul.f32 %v248, %v250
        %s252 = scalar_lea.vmem %s231, 2 [#allocation9]
        %253 = vst.msk [vmem:[%s252] sm:$0x3] %vm242, %v251
        %s254 = scalar_lea.vmem %s208, 4 [#allocation8]
        %v255 = vld [vmem:[%s254] sm:$0x3]
        %s256 = sld [smem:[#allocation2 + $0x2]]
        %v257 = vstv %s256
        %v258 = vsub.f32 %v255, %v257
        %s259 = sld [smem:[#allocation7 + $0x2]]
        %v260 = vstv %s259
        %v261 = vmul.f32 %v258, %v260
        %s262 = scalar_lea.vmem %s231, 4 [#allocation9]
        %263 = vst.msk [vmem:[%s262] sm:$0x3] %vm242, %v261
        %s264 = sand.u32 %s114, 1
        %s265 = scalar_lea.sflag [#allocation4], %s264
        %s266 = sand.u32 %s114, 1
        %s267 = smul.addr %s266, 6
        %s268 = scalar_lea.vmem [#allocation9], %s267
        // Predicated region
        $region45: #{tpu_custom_call.1} parent=31 // pred_check
          %p269 = pneg %p124
        $region46: #{tpu_custom_call.1} parent=31 // pred_check_branch
          %271 = sbr.rel (%p269) target = $region48
        $region47: #{tpu_custom_call.1} parent=31 // pred_region
          %s273 = ssub.s32 96, 96
          %274 = vsyncadd %s265, %s273
          %s275 = smul.addr %s27, 2
          %s276 = smul.addr %s26, 6
          %s277 = sadd.s32 %s275, %s276
          %s278 = smul.addr %s277, 16
          %s279 = scalar_lea.hbm %s3, %s278
          %s280 = sshll.u32 %s268, 4
          %s281 = int_to_ptr.vmem [resolvable:$true] %s280
          %286 = dma.vmem_to_hbm [thread:$0]  %s281, 96, %s279, %s265, 32, 32, 2
        $region48: #{tpu_custom_call.1} parent=31 // pred_fallthru
          _
      $region32: #{tpu_custom_call.1} parent=5 // pred_fallthru
        _
      %p287 = scmp.le.s32.totalorder 2, %s17
      // Predicated region
      $region49: #{tpu_custom_call.1} parent=5 // pred_check
        %p288 = pneg %p287
      $region50: #{tpu_custom_call.1} parent=5 // pred_check_branch
        %290 = sbr.rel (%p288) target = $region52
      $region51: #{tpu_custom_call.1} parent=5 // pred_region
        %s291 = ssub.s32 %s17, 2
        // Predicated region
        $region53: #{tpu_custom_call.1} parent=51 // pred_check
          %p292 = pneg %p130
        $region54: #{tpu_custom_call.1} parent=51 // pred_check_branch
          %294 = sbr.rel (%p292) target = $region56
        $region55: #{tpu_custom_call.1} parent=51 // pred_region
          %s295 = sand.u32 %s115, 1
          %s296 = scalar_lea.sflag [#allocation4], %s295
          %s297 = sand.u32 %s115, 1
          %s298 = smul.addr %s297, 6
          %s299 = scalar_lea.vmem [#allocation9], %s298
          %300 = dma.done %s296, 96
        $region56: #{tpu_custom_call.1} parent=51 // pred_fallthru
          _
      $region52: #{tpu_custom_call.1} parent=5 // pred_fallthru
        _
    $region6: #{tpu_custom_call.1} parent=1 // loop_footer
      %s21 = sadd.s32 1, %s17
    $region7: #{tpu_custom_call.1} parent=1 // loop_footer_branch
      %16 = sbr.rel target = $region3
    $region8: #{tpu_custom_call.1} parent=1 // loop_exit
      _
    %301 = vsyncpa [#allocation3], 1
    %s302 = scalar_lea.sflag [#allocation3], 1
    %303 = vsyncpa %s302, 1
    %304 = vsyncpa [#allocation4], 1
    %s305 = scalar_lea.sflag [#allocation4], 1
    %306 = vsyncpa %s305, 1
    %307 = vsyncpa [#allocation5], 1
    %s308 = scalar_lea.sflag [#allocation5], 1
    %309 = vsyncpa %s308, 1
    %310 = vsyncpa [#allocation6], 1
    %s311 = scalar_lea.sflag [#allocation6], 1
    %312 = vsyncpa %s311, 1

</llo_original>
